<compile_context>
chip_gen: v6e
topology: v6e:2x2x1
jax: 0.10.0
libtpu: 0.0.40
codegen_flags: <defaults>
</compile_context>

<pallas_src>
import jax
import jax.numpy as jnp
from jax.experimental import pallas as pl
from jax.experimental.pallas import tpu as pltpu


def _round_up(x, m):
    return ((x + m - 1) // m) * m


def _make_kernel(c_in, c_out):
    """Fused 1x1 conv + (channel softmax | sigmoid) kernel body.

    w_ref: (C_out, C_in) f32 SMEM, b_ref: (C_out,) f32 SMEM,
    x_ref: (C_in, rows, lanes) VMEM (native dtype),
    o_ref: (C_out, rows, lanes) VMEM (native dtype).
    """

    def kernel(w_ref, b_ref, x_ref, o_ref):
        # Load each channel slab once; cast to f32 at the load boundary only.
        xs = [x_ref[k].astype(jnp.float32) for k in range(c_in)]

        # 1x1 conv as VPU broadcast FMAs with scalar weights from SMEM
        # (channel counts are tiny -> MXU would run at <1% utilization).
        ys = []
        for c in range(c_out):
            acc = xs[0] * w_ref[c, 0]
            for k in range(1, c_in):
                acc = acc + xs[k] * w_ref[c, k]
            ys.append(acc + b_ref[c])

        if c_out > 1:
            # Channel softmax per pixel.  Subtracting the per-pixel channel
            # max is equivalent to the reference's global-max shift (softmax
            # is shift-invariant) and keeps exp() in range.  Note: garbage in
            # OOB lanes of a partial last block stays lane-local and is
            # masked on store.
            m = ys[0]
            for c in range(1, c_out):
                m = jnp.maximum(m, ys[c])
            es = [jnp.exp(y - m) for y in ys]
            s = es[0]
            for c in range(1, c_out):
                s = s + es[c]
            # approx reciprocal rides the otherwise-idle EUP slot
            # (rel. err ~2^-12; softmax rows sum to 1 only approximately).
            inv = pl.reciprocal(s, approx=True)
            for c in range(c_out):
                o_ref[c] = (es[c] * inv).astype(o_ref.dtype)
        else:
            y = ys[0]
            sig = pl.reciprocal(1.0 + jnp.exp(-y), approx=True)
            o_ref[0] = sig.astype(o_ref.dtype)

    return kernel


def out_conv_v2(x, weight, bias, *, tile_pixels=65536):
    """Fused forward of OutConv_v2.

    x: (N, C_in, H, W); weight: (C_out, C_in, 1, 1); bias: (C_out,).
    Returns (N, C_out, H, W) in x.dtype.
    """
    N, C_in, H, W = x.shape
    C_out = weight.shape[0]
    HW = H * W

    # Weights / bias are tiny: f32 scalars in SMEM.
    w_mat = weight.reshape(C_out, C_in).astype(jnp.float32)
    b_vec = bias.reshape(C_out).astype(jnp.float32)

    # ---- Layout: pure (free) reshapes only; no pads, no post-slices, no
    # ---- transposes, no dtype copies in HBM.
    if HW % 128 == 0:
        # Sublane-dense path: pixel axis -> (rows, 128).
        R, L = HW // 128, 128
        desired_rows = max(8, tile_pixels // 128)        # multiple of 8
        rows = R if desired_rows >= R else desired_rows  # full dim or 8-aligned
        grid_r = pl.cdiv(R, rows)
        # v7x megacore: guarantee >= 2 total grid steps when possible.
        if N * grid_r < 2 and R >= 16:
            rows = _round_up(pl.cdiv(R, 2), 8)
            grid_r = pl.cdiv(R, rows)
        x_ops = x.reshape(N, C_in, R, L)
        block_in = (None, C_in, rows, L)
        block_out = (None, C_out, rows, L)
        index_map = lambda n, r: (n, 0, r, 0)
    else:
        # Fallback: HW not 128-aligned.  Keep pixels purely on lanes instead
        # of padding in HBM; a partial last block is OOB-masked by Pallas.
        R, L = 1, HW
        if HW <= tile_pixels:
            lanes = HW                                   # full-dim block
        else:
            lanes = _round_up(tile_pixels, 128)          # 128-aligned tile
        grid_r = pl.cdiv(HW, lanes)
        if N * grid_r < 2 and HW >= 256:
            lanes = _round_up(pl.cdiv(HW, 2), 128)
            grid_r = pl.cdiv(HW, lanes)
        x_ops = x.reshape(N, C_in, 1, HW)
        block_in = (None, C_in, 1, lanes)
        block_out = (None, C_out, 1, lanes)
        index_map = lambda n, r: (n, 0, 0, r)

    grid = (N, grid_r)
    out = pl.pallas_call(
        _make_kernel(C_in, C_out),
        out_shape=jax.ShapeDtypeStruct((N, C_out, R, L), x.dtype),
        grid=grid,
        in_specs=[
            pl.BlockSpec(memory_space=pltpu.MemorySpace.SMEM),  # weights
            pl.BlockSpec(memory_space=pltpu.MemorySpace.SMEM),  # bias
            pl.BlockSpec(block_in, index_map),
        ],
        out_specs=pl.BlockSpec(block_out, index_map),
        compiler_params=pltpu.CompilerParams(
            dimension_semantics=("parallel", "parallel")),
    )(w_mat, b_vec, x_ops)

    return out.reshape(N, C_out, H, W)


def _reference(x, weight, bias):
    """Pure-JAX reference matching the PyTorch module's forward."""
    C_out = weight.shape[0]
    w = weight.reshape(C_out, weight.shape[1]).astype(jnp.float32)
    y = jnp.einsum('nchw,oc->nohw', x.astype(jnp.float32), w)
    y = y + bias.reshape(1, C_out, 1, 1).astype(jnp.float32)
    if C_out > 1:
        y = y - jnp.max(y)                      # global shift (no-op for softmax)
        return jax.nn.softmax(y, axis=1)
    return jax.nn.sigmoid(y)


if __name__ == "__main__":
    key = jax.random.PRNGKey(0)
    k_x, k_w1, k_b1, k_w2, k_b2, k_x2 = jax.random.split(key, 6)

    N, C_in, H, W = 2, 4, 16, 16
    x = jax.random.normal(k_x, (N, C_in, H, W), dtype=jnp.float32)
    bound = 1.0 / jnp.sqrt(C_in * 1 * 1)

    # ----- multi-channel path (channel softmax), 128-aligned HW -----
    C_out = 3
    w_multi = jax.random.uniform(k_w1, (C_out, C_in, 1, 1),
                                 minval=-bound, maxval=bound, dtype=jnp.float32)
    b_multi = jax.random.uniform(k_b1, (C_out,),
                                 minval=-bound, maxval=bound, dtype=jnp.float32)
    out_multi = out_conv_v2(x, w_multi, b_multi)
    jax.block_until_ready(out_multi)
    assert out_multi.shape == (N, C_out, H, W)
    ref_multi = _reference(x, w_multi, b_multi)
    assert jnp.allclose(out_multi, ref_multi, rtol=2e-3, atol=2e-3)

    # ----- single-channel path (sigmoid) -----
    w_single = jax.random.uniform(k_w2, (1, C_in, 1, 1),
                                  minval=-bound, maxval=bound, dtype=jnp.float32)
    b_single = jax.random.uniform(k_b2, (1,),
                                  minval=-bound, maxval=bound, dtype=jnp.float32)
    out_single = out_conv_v2(x, w_single, b_single)
    jax.block_until_ready(out_single)
    assert out_single.shape == (N, 1, H, W)
    ref_single = _reference(x, w_single, b_single)
    assert jnp.allclose(out_single, ref_single, rtol=2e-3, atol=2e-3)

    # ----- non-128-aligned spatial size (fallback lane-only path) -----
    H2, W2 = 10, 10
    x_odd = jax.random.normal(k_x2, (N, C_in, H2, W2), dtype=jnp.float32)
    out_odd = out_conv_v2(x_odd, w_multi, b_multi)
    jax.block_until_ready(out_odd)
    assert out_odd.shape == (N, C_out, H2, W2)
    ref_odd = _reference(x_odd, w_multi, b_multi)
    assert jnp.allclose(out_odd, ref_odd, rtol=2e-3, atol=2e-3)

    print("KERNEL_OK")
</pallas_src>

<mosaic_0001>
module attributes {stable_mosaic.version = 11 : i64} {
  func.func @kernel(%arg0: i32, %arg1: i32, %arg2: memref<3x4xf32, #tpu.memory_space<smem>>, %arg3: memref<3xf32, #tpu.memory_space<smem>>, %arg4: memref<1x4x2x128xf32, #tpu.memory_space<vmem>>, %arg5: memref<1x3x2x128xf32, #tpu.memory_space<vmem>>) attributes {dimension_semantics = [#tpu.dimension_semantics<parallel>, #tpu.dimension_semantics<parallel>], iteration_bounds = array<i64: 2, 1>, scalar_prefetch = 0 : i64, scratch_operands = 0 : i64, tpu.core_type = #tpu.core_type<tc>, window_params = [{transform_indices = @transform_0, window_bounds = array<i64: 3, 4>}, {transform_indices = @transform_1, window_bounds = array<i64: 3>}, {transform_indices = @transform_2, window_bounds = array<i64: 1, 4, 2, 128>}, {transform_indices = @transform_3, window_bounds = array<i64: 1, 3, 2, 128>}]} {
    %c0 = arith.constant 0 : index
    %c0_0 = arith.constant 0 : index
    %c0_1 = arith.constant 0 : index
    %c0_2 = arith.constant 0 : index
    %0 = vector.load %arg4[%c0, %c0_0, %c0_1, %c0_2] : memref<1x4x2x128xf32, #tpu.memory_space<vmem>>, vector<1x1x2x128xf32>
    %1 = vector.shape_cast %0 : vector<1x1x2x128xf32> to vector<2x128xf32>
    %c0_3 = arith.constant 0 : index
    %c1 = arith.constant 1 : index
    %c0_4 = arith.constant 0 : index
    %c0_5 = arith.constant 0 : index
    %2 = vector.load %arg4[%c0_3, %c1, %c0_4, %c0_5] : memref<1x4x2x128xf32, #tpu.memory_space<vmem>>, vector<1x1x2x128xf32>
    %3 = vector.shape_cast %2 : vector<1x1x2x128xf32> to vector<2x128xf32>
    %c0_6 = arith.constant 0 : index
    %c2 = arith.constant 2 : index
    %c0_7 = arith.constant 0 : index
    %c0_8 = arith.constant 0 : index
    %4 = vector.load %arg4[%c0_6, %c2, %c0_7, %c0_8] : memref<1x4x2x128xf32, #tpu.memory_space<vmem>>, vector<1x1x2x128xf32>
    %5 = vector.shape_cast %4 : vector<1x1x2x128xf32> to vector<2x128xf32>
    %c0_9 = arith.constant 0 : index
    %c3 = arith.constant 3 : index
    %c0_10 = arith.constant 0 : index
    %c0_11 = arith.constant 0 : index
    %6 = vector.load %arg4[%c0_9, %c3, %c0_10, %c0_11] : memref<1x4x2x128xf32, #tpu.memory_space<vmem>>, vector<1x1x2x128xf32>
    %7 = vector.shape_cast %6 : vector<1x1x2x128xf32> to vector<2x128xf32>
    %c0_12 = arith.constant 0 : index
    %c0_13 = arith.constant 0 : index
    %8 = memref.load %arg2[%c0_12, %c0_13] : memref<3x4xf32, #tpu.memory_space<smem>>
    %9 = vector.broadcast %8 : f32 to vector<2x128xf32>
    %10 = arith.mulf %1, %9 : vector<2x128xf32>
    %c0_14 = arith.constant 0 : index
    %c1_15 = arith.constant 1 : index
    %11 = memref.load %arg2[%c0_14, %c1_15] : memref<3x4xf32, #tpu.memory_space<smem>>
    %12 = vector.broadcast %11 : f32 to vector<2x128xf32>
    %13 = arith.mulf %3, %12 : vector<2x128xf32>
    %14 = arith.addf %10, %13 : vector<2x128xf32>
    %c0_16 = arith.constant 0 : index
    %c2_17 = arith.constant 2 : index
    %15 = memref.load %arg2[%c0_16, %c2_17] : memref<3x4xf32, #tpu.memory_space<smem>>
    %16 = vector.broadcast %15 : f32 to vector<2x128xf32>
    %17 = arith.mulf %5, %16 : vector<2x128xf32>
    %18 = arith.addf %14, %17 : vector<2x128xf32>
    %c0_18 = arith.constant 0 : index
    %c3_19 = arith.constant 3 : index
    %19 = memref.load %arg2[%c0_18, %c3_19] : memref<3x4xf32, #tpu.memory_space<smem>>
    %20 = vector.broadcast %19 : f32 to vector<2x128xf32>
    %21 = arith.mulf %7, %20 : vector<2x128xf32>
    %22 = arith.addf %18, %21 : vector<2x128xf32>
    %c0_20 = arith.constant 0 : index
    %23 = memref.load %arg3[%c0_20] : memref<3xf32, #tpu.memory_space<smem>>
    %24 = vector.broadcast %23 : f32 to vector<2x128xf32>
    %25 = arith.addf %22, %24 : vector<2x128xf32>
    %c1_21 = arith.constant 1 : index
    %c0_22 = arith.constant 0 : index
    %26 = memref.load %arg2[%c1_21, %c0_22] : memref<3x4xf32, #tpu.memory_space<smem>>
    %27 = vector.broadcast %26 : f32 to vector<2x128xf32>
    %28 = arith.mulf %1, %27 : vector<2x128xf32>
    %c1_23 = arith.constant 1 : index
    %c1_24 = arith.constant 1 : index
    %29 = memref.load %arg2[%c1_23, %c1_24] : memref<3x4xf32, #tpu.memory_space<smem>>
    %30 = vector.broadcast %29 : f32 to vector<2x128xf32>
    %31 = arith.mulf %3, %30 : vector<2x128xf32>
    %32 = arith.addf %28, %31 : vector<2x128xf32>
    %c1_25 = arith.constant 1 : index
    %c2_26 = arith.constant 2 : index
    %33 = memref.load %arg2[%c1_25, %c2_26] : memref<3x4xf32, #tpu.memory_space<smem>>
    %34 = vector.broadcast %33 : f32 to vector<2x128xf32>
    %35 = arith.mulf %5, %34 : vector<2x128xf32>
    %36 = arith.addf %32, %35 : vector<2x128xf32>
    %c1_27 = arith.constant 1 : index
    %c3_28 = arith.constant 3 : index
    %37 = memref.load %arg2[%c1_27, %c3_28] : memref<3x4xf32, #tpu.memory_space<smem>>
    %38 = vector.broadcast %37 : f32 to vector<2x128xf32>
    %39 = arith.mulf %7, %38 : vector<2x128xf32>
    %40 = arith.addf %36, %39 : vector<2x128xf32>
    %c1_29 = arith.constant 1 : index
    %41 = memref.load %arg3[%c1_29] : memref<3xf32, #tpu.memory_space<smem>>
    %42 = vector.broadcast %41 : f32 to vector<2x128xf32>
    %43 = arith.addf %40, %42 : vector<2x128xf32>
    %c2_30 = arith.constant 2 : index
    %c0_31 = arith.constant 0 : index
    %44 = memref.load %arg2[%c2_30, %c0_31] : memref<3x4xf32, #tpu.memory_space<smem>>
    %45 = vector.broadcast %44 : f32 to vector<2x128xf32>
    %46 = arith.mulf %1, %45 : vector<2x128xf32>
    %c2_32 = arith.constant 2 : index
    %c1_33 = arith.constant 1 : index
    %47 = memref.load %arg2[%c2_32, %c1_33] : memref<3x4xf32, #tpu.memory_space<smem>>
    %48 = vector.broadcast %47 : f32 to vector<2x128xf32>
    %49 = arith.mulf %3, %48 : vector<2x128xf32>
    %50 = arith.addf %46, %49 : vector<2x128xf32>
    %c2_34 = arith.constant 2 : index
    %c2_35 = arith.constant 2 : index
    %51 = memref.load %arg2[%c2_34, %c2_35] : memref<3x4xf32, #tpu.memory_space<smem>>
    %52 = vector.broadcast %51 : f32 to vector<2x128xf32>
    %53 = arith.mulf %5, %52 : vector<2x128xf32>
    %54 = arith.addf %50, %53 : vector<2x128xf32>
    %c2_36 = arith.constant 2 : index
    %c3_37 = arith.constant 3 : index
    %55 = memref.load %arg2[%c2_36, %c3_37] : memref<3x4xf32, #tpu.memory_space<smem>>
    %56 = vector.broadcast %55 : f32 to vector<2x128xf32>
    %57 = arith.mulf %7, %56 : vector<2x128xf32>
    %58 = arith.addf %54, %57 : vector<2x128xf32>
    %c2_38 = arith.constant 2 : index
    %59 = memref.load %arg3[%c2_38] : memref<3xf32, #tpu.memory_space<smem>>
    %60 = vector.broadcast %59 : f32 to vector<2x128xf32>
    %61 = arith.addf %58, %60 : vector<2x128xf32>
    %62 = arith.maximumf %25, %43 : vector<2x128xf32>
    %63 = arith.maximumf %62, %61 : vector<2x128xf32>
    %64 = arith.subf %25, %63 : vector<2x128xf32>
    %65 = math.exp %64 : vector<2x128xf32>
    %66 = arith.subf %43, %63 : vector<2x128xf32>
    %67 = math.exp %66 : vector<2x128xf32>
    %68 = arith.subf %61, %63 : vector<2x128xf32>
    %69 = math.exp %68 : vector<2x128xf32>
    %70 = arith.addf %65, %67 : vector<2x128xf32>
    %71 = arith.addf %70, %69 : vector<2x128xf32>
    %72 = tpu.reciprocal %71 {approx = true} : vector<2x128xf32> -> vector<2x128xf32>
    %73 = arith.mulf %65, %72 : vector<2x128xf32>
    %c0_39 = arith.constant 0 : index
    %c0_40 = arith.constant 0 : index
    %c0_41 = arith.constant 0 : index
    %c0_42 = arith.constant 0 : index
    %74 = vector.load %arg5[%c0_39, %c0_40, %c0_41, %c0_42] : memref<1x3x2x128xf32, #tpu.memory_space<vmem>>, vector<1x1x2x128xf32>
    %75 = vector.shape_cast %74 : vector<1x1x2x128xf32> to vector<2x128xf32>
    %76 = vector.shape_cast %73 : vector<2x128xf32> to vector<1x1x2x128xf32>
    tpu.vector_store %arg5[%c0_39, %c0_40, %c0_41, %c0_42], %76 {strides = array<i32>} : memref<1x3x2x128xf32, #tpu.memory_space<vmem>>, vector<1x1x2x128xf32>,
    %77 = arith.mulf %67, %72 : vector<2x128xf32>
    %c0_43 = arith.constant 0 : index
    %c1_44 = arith.constant 1 : index
    %c0_45 = arith.constant 0 : index
    %c0_46 = arith.constant 0 : index
    %78 = vector.load %arg5[%c0_43, %c1_44, %c0_45, %c0_46] : memref<1x3x2x128xf32, #tpu.memory_space<vmem>>, vector<1x1x2x128xf32>
    %79 = vector.shape_cast %78 : vector<1x1x2x128xf32> to vector<2x128xf32>
    %80 = vector.shape_cast %77 : vector<2x128xf32> to vector<1x1x2x128xf32>
    tpu.vector_store %arg5[%c0_43, %c1_44, %c0_45, %c0_46], %80 {strides = array<i32>} : memref<1x3x2x128xf32, #tpu.memory_space<vmem>>, vector<1x1x2x128xf32>,
    %81 = arith.mulf %69, %72 : vector<2x128xf32>
    %c0_47 = arith.constant 0 : index
    %c2_48 = arith.constant 2 : index
    %c0_49 = arith.constant 0 : index
    %c0_50 = arith.constant 0 : index
    %82 = vector.load %arg5[%c0_47, %c2_48, %c0_49, %c0_50] : memref<1x3x2x128xf32, #tpu.memory_space<vmem>>, vector<1x1x2x128xf32>
    %83 = vector.shape_cast %82 : vector<1x1x2x128xf32> to vector<2x128xf32>
    %84 = vector.shape_cast %81 : vector<2x128xf32> to vector<1x1x2x128xf32>
    tpu.vector_store %arg5[%c0_47, %c2_48, %c0_49, %c0_50], %84 {strides = array<i32>} : memref<1x3x2x128xf32, #tpu.memory_space<vmem>>, vector<1x1x2x128xf32>,
    return
  }
  func.func @transform_0(%arg0: i32, %arg1: i32) -> (i32, i32) {
    %c0_i32 = arith.constant 0 : i32
    %c0_i32_0 = arith.constant 0 : i32
    %c0_i32_1 = arith.constant 0 : i32
    return %c0_i32, %c0_i32_0 : i32, i32
  }
  func.func @transform_1(%arg0: i32, %arg1: i32) -> i32 {
    %c0_i32 = arith.constant 0 : i32
    %c0_i32_0 = arith.constant 0 : i32
    return %c0_i32 : i32
  }
  func.func @transform_2(%arg0: i32, %arg1: i32) -> (i32, i32, i32, i32) {
    %c0_i32 = arith.constant 0 : i32
    %c0_i32_0 = arith.constant 0 : i32
    %c0_i32_1 = arith.constant 0 : i32
    return %arg0, %c0_i32, %arg1, %c0_i32_0 : i32, i32, i32, i32
  }
  func.func @transform_3(%arg0: i32, %arg1: i32) -> (i32, i32, i32, i32) {
    %c0_i32 = arith.constant 0 : i32
    %c0_i32_0 = arith.constant 0 : i32
    %c0_i32_1 = arith.constant 0 : i32
    return %arg0, %c0_i32, %arg1, %c0_i32_0 : i32, i32, i32, i32
  }
}

</mosaic_0001>

<llo_original>
// kernel: tpu_custom_call.1
$region0: #{tpu_custom_call.1}
  #allocation0 [shape = 'u32[]', space=smem, size = 0x4, offset = 0x4, fixed_abs, tag = 'smem constant byte address 0x4 - core index']
  #allocation1 [shape = 'u32[144,128]{1,0:T(1,128)}', space=vmem, size = 0x12000, scoped, tag = 'internal scratch']
  %s0 = inlined_call_operand.hbm [shape: f32[3,4], index: 0, kind: input, shape index: {}]
  %s1 = inlined_call_operand.vmem [shape: f32[3], index: 1, kind: input, shape index: {}]
  %s2 = inlined_call_operand.hbm [shape: f32[2,4,2,128], index: 2, kind: input, shape index: {}]
  %s3 = inlined_call_operand.hbm [shape: f32[2,3,2,128], index: 3, kind: output, shape index: {}]
  %s4 = sld [smem:[#allocation0]]
  $region57: #{tpu_custom_call.1} parent=0
    _
  %s6 = ssub.s32 1, %s4
  %s7 = scalar_select 0, %s6, %s4
  $region1: #{tpu_custom_call.1} parent=0
    #allocation2 [shape = 'u8[2048]{0}', space=smem, size = 0x800, scoped, tag = 'input window, operand 0, single buffered']
    #allocation3 [shape = 's32[2]{0}', space=sflag, size = 0x8, scoped, tag = 'scoped memory for tpu_custom_call.1']
    #allocation4 [shape = 's32[2]{0}', space=sflag, size = 0x8, scoped, tag = 'scoped memory for tpu_custom_call.1']
    #allocation5 [shape = 's32[2]{0}', space=sflag, size = 0x8, scoped, tag = 'scoped memory for tpu_custom_call.1']
    #allocation6 [shape = 's32[2]{0}', space=sflag, size = 0x8, scoped, tag = 'scoped memory for tpu_custom_call.1']
    #allocation7 [shape = 'u8[512]{0}', space=smem, size = 0x200, scoped, tag = 'input window, operand 1, single buffered']
    #allocation8 [shape = 'u8[8192]{0}', space=vmem, size = 0x2000, scoped, tag = 'input window, operand 2']
    #allocation9 [shape = 'u8[6144]{0}', space=vmem, size = 0x1800, scoped, tag = 'output window, operand 0']
    %8 = vsyncpa [#allocation5], 0
    %9 = vsyncpa [#allocation6], 0
    %10 = vsyncpa [#allocation3], 0
    %s11 = scalar_lea.sflag [#allocation3], 1
    %12 = vsyncpa %s11, 0
    %13 = vsyncpa [#allocation4], 0
    %s14 = scalar_lea.sflag [#allocation4], 1
    %15 = vsyncpa %s14, 0
    loop: start=0, step=1, limit=4
    $region2: #{tpu_custom_call.1} parent=1 // loop_pre_header
      _
    $region3: #{tpu_custom_call.1} parent=1 // loop_header
      %s17 = sphi 0, %s21
      %p18 = scmp.ge.s32.totalorder %s17, 4
      %s24 = sphi 0, %s36
      %s25 = sphi 0, %s32
      %s26 = sphi 0, %s24
      %s27 = sphi 0, %s25
      %s28 = sphi 0, %s26
      %s29 = sphi 0, %s27
      %s37 = sphi 0, %s37
      %s39 = sphi 0, %s37
      %s40 = sphi 0, %s39
      %s54 = sphi 0, %s40
      %s58 = sphi 0, %s58
      %s60 = sphi 0, %s58
      %s61 = sphi 0, %s60
      %s75 = sphi 0, %s61
      %s83 = sphi 0, %s85
      %s86 = sphi 0, %s83
      %s87 = sphi 0, %s86
      %s103 = sphi 0, %s87
      %s111 = sphi 0, %s113
      %s114 = sphi 0, %s111
      %s115 = sphi 0, %s114
      %s131 = sphi 0, %s115
    $region4: #{tpu_custom_call.1} parent=1 // loop_header_branch
      %20 = sbr.rel (%p18) target = $region8
    $region5: #{tpu_custom_call.1} parent=1 // loop_body
      %s22 = ssub.s32 %s17, 1
      %s23 = ssub.s32 %s17, 2
      %s30 = sadd.s32 1, %s25
      %p31 = scmp.ge.s32.totalorder %s30, 1
      %s32 = scalar_select %p31, 0, %s30
      %s33 = sadd.s32 1, %s24
      %s34 = scalar_select %p31, %s33, %s24
      %p35 = scmp.ge.s32.totalorder %s34, 2
      %s36 = scalar_select %p35, 0, %s34
      %s38 = sadd.s32 %s37, 1
      %p41 = scmp.eq.s32.totalorder %s17, 1
      %p42 = scmp.ne.s32.totalorder %s37, %s39
      %p43 = scmp.eq.s32.totalorder %s17, 0
      %p44 = por %p42, %p43
      %p45 = scmp.ne.s32.totalorder %s37, %s39
      %p46 = scmp.eq.s32.totalorder %s22, 1
      %p47 = por %p45, %p46
      %p48 = scmp.ne.s32.totalorder %s39, %s40
      %p49 = scmp.eq.s32.totalorder %s22, 0
      %p50 = por %p48, %p49
      %p51 = scmp.ne.s32.totalorder %s39, %s40
      %p52 = scmp.eq.s32.totalorder %s23, 1
      %p53 = por %p51, %p52
      %p55 = scmp.ne.s32.totalorder %s40, %s54
      %p56 = scmp.eq.s32.totalorder %s23, 0
      %p57 = por %p55, %p56
      %s59 = sadd.s32 %s58, 1
      %p62 = scmp.eq.s32.totalorder %s17, 1
      %p63 = scmp.ne.s32.totalorder %s58, %s60
      %p64 = scmp.eq.s32.totalorder %s17, 0
      %p65 = por %p63, %p64
      %p66 = scmp.ne.s32.totalorder %s58, %s60
      %p67 = scmp.eq.s32.totalorder %s22, 1
      %p68 = por %p66, %p67
      %p69 = scmp.ne.s32.totalorder %s60, %s61
      %p70 = scmp.eq.s32.totalorder %s22, 0
      %p71 = por %p69, %p70
      %p72 = scmp.ne.s32.totalorder %s60, %s61
      %p73 = scmp.eq.s32.totalorder %s23, 1
      %p74 = por %p72, %p73
      %p76 = scmp.ne.s32.totalorder %s61, %s75
      %p77 = scmp.eq.s32.totalorder %s23, 0
      %p78 = por %p76, %p77
      %s79 = ssub.s32 %s24, %s36
      %s80 = ssub.s32 %s25, %s32
      %s81 = sor.u32 %s79, %s80
      %p82 = scmp.eq.s32.totalorder %s81, 0
      %s84 = sadd.s32 %s83, 1
      %s85 = scalar_select %p82, %s83, %s84
      %p88 = pneg %p82
      %p89 = scmp.eq.s32.totalorder %s17, 1
      %p90 = por %p88, %p89
      %p91 = scmp.ne.s32.totalorder %s83, %s86
      %p92 = scmp.eq.s32.totalorder %s17, 0
      %p93 = por %p91, %p92
      %p94 = scmp.ne.s32.totalorder %s83, %s86
      %p95 = scmp.eq.s32.totalorder %s22, 1
      %p96 = por %p94, %p95
      %p97 = scmp.ne.s32.totalorder %s86, %s87
      %p98 = scmp.eq.s32.totalorder %s22, 0
      %p99 = por %p97, %p98
      %p100 = scmp.ne.s32.totalorder %s86, %s87
      %p101 = scmp.eq.s32.totalorder %s23, 1
      %p102 = por %p100, %p101
      %p104 = scmp.ne.s32.totalorder %s87, %s103
      %p105 = scmp.eq.s32.totalorder %s23, 0
      %p106 = por %p104, %p105
      %s107 = ssub.s32 %s24, %s36
      %s108 = ssub.s32 %s25, %s32
      %s109 = sor.u32 %s107, %s108
      %p110 = scmp.eq.s32.totalorder %s109, 0
      %s112 = sadd.s32 %s111, 1
      %s113 = scalar_select %p110, %s111, %s112
      %p116 = pneg %p110
      %p117 = scmp.eq.s32.totalorder %s17, 1
      %p118 = por %p116, %p117
      %p119 = scmp.ne.s32.totalorder %s111, %s114
      %p120 = scmp.eq.s32.totalorder %s17, 0
      %p121 = por %p119, %p120
      %p122 = scmp.ne.s32.totalorder %s111, %s114
      %p123 = scmp.eq.s32.totalorder %s22, 1
      %p124 = por %p122, %p123
      %p125 = scmp.ne.s32.totalorder %s114, %s115
      %p126 = scmp.eq.s32.totalorder %s22, 0
      %p127 = por %p125, %p126
      %p128 = scmp.ne.s32.totalorder %s114, %s115
      %p129 = scmp.eq.s32.totalorder %s23, 1
      %p130 = por %p128, %p129
      %p132 = scmp.ne.s32.totalorder %s115, %s131
      %p133 = scmp.eq.s32.totalorder %s23, 0
      %p134 = por %p132, %p133
      %p135 = scmp.le.s32.totalorder 1, %s17
      %p136 = scmp.lt.s32.totalorder %s17, 3
      %p137 = pnand %p135, %p136
      %p138 = pneg %p137
      // Predicated region
      $region9: #{tpu_custom_call.1} parent=5 // pred_check
        _
      $region10: #{tpu_custom_call.1} parent=5 // pred_check_branch
        %140 = sbr.rel (%p137) target = $region12
      $region11: #{tpu_custom_call.1} parent=5 // pred_region
        %s141 = ssub.s32 %s17, 1
        // Predicated region
        $region13: #{tpu_custom_call.1} parent=11 // pred_check
          %p142 = pneg %p50
        $region14: #{tpu_custom_call.1} parent=11 // pred_check_branch
          %144 = sbr.rel (%p142) target = $region16
        $region15: #{tpu_custom_call.1} parent=11 // pred_region
          %s146 = ssub.s32 64, 64
          %147 = vsyncadd [#allocation5], %s146
          %150 = dma.hbm_to_smem %s0, 64, [#allocation2], [#allocation5]
        $region16: #{tpu_custom_call.1} parent=11 // pred_fallthru
          _
        // Predicated region
        $region17: #{tpu_custom_call.1} parent=11 // pred_check
          %p151 = pneg %p71
        $region18: #{tpu_custom_call.1} parent=11 // pred_check_branch
          %153 = sbr.rel (%p151) target = $region20
        $region19: #{tpu_custom_call.1} parent=11 // pred_region
          %s155 = ssub.s32 16, 16
          %156 = vsyncadd [#allocation6], %s155
          %s158 = sshll.u32 %s1, 4
          %s159 = int_to_ptr.vmem [resolvable:$true] %s158
          %161 = dma.vmem_to_smem %s159, 16, [#allocation7], [#allocation6]
        $region20: #{tpu_custom_call.1} parent=11 // pred_fallthru
          _
      $region12: #{tpu_custom_call.1} parent=5 // pred_fallthru
        _
      %p162 = scmp.lt.s32.totalorder %s17, 2
      // Predicated region
      $region21: #{tpu_custom_call.1} parent=5 // pred_check
        %p163 = pneg %p162
      $region22: #{tpu_custom_call.1} parent=5 // pred_check_branch
        %165 = sbr.rel (%p163) target = $region24
      $region23: #{tpu_custom_call.1} parent=5 // pred_region
        // Predicated region
        $region25: #{tpu_custom_call.1} parent=23 // pred_check
          %p166 = pneg %p93
        $region26: #{tpu_custom_call.1} parent=23 // pred_check_branch
          %168 = sbr.rel (%p166) target = $region28
        $region27: #{tpu_custom_call.1} parent=23 // pred_region
          %s169 = sand.u32 %s83, 1
          %s170 = scalar_lea.sflag [#allocation3], %s169
          %s171 = sand.u32 %s83, 1
          %s172 = smul.addr %s171, 8
          %s173 = scalar_lea.vmem [#allocation8], %s172
          %s175 = ssub.s32 128, 128
          %176 = vsyncadd %s170, %s175
          %s177 = smul.addr %s24, 4
          %s178 = sadd.s32 %s25, %s177
          %s179 = smul.addr %s178, 32
          %s180 = scalar_lea.hbm %s2, %s179
          %s181 = sshll.u32 %s173, 4
          %s182 = int_to_ptr.vmem [resolvable:$true] %s181
          %187 = dma.hbm_to_vmem [thread:$0]  %s180, 128, %s182, %s170, 32, 32, 2
        $region28: #{tpu_custom_call.1} parent=23 // pred_fallthru
          _
      $region24: #{tpu_custom_call.1} parent=5 // pred_fallthru
        _
      %p188 = scmp.le.s32.totalorder 1, %s17
      %p189 = scmp.lt.s32.totalorder %s17, 3
      %p190 = pnand %p188, %p189
      %p191 = pneg %p190
      // Predicated region
      $region29: #{tpu_custom_call.1} parent=5 // pred_check
        _
      $region30: #{tpu_custom_call.1} parent=5 // pred_check_branch
        %193 = sbr.rel (%p190) target = $region32
      $region31: #{tpu_custom_call.1} parent=5 // pred_region
        %s194 = ssub.s32 %s17, 1
        // Predicated region
        $region33: #{tpu_custom_call.1} parent=31 // pred_check
          %p195 = pneg %p50
        $region34: #{tpu_custom_call.1} parent=31 // pred_check_branch
          %197 = sbr.rel (%p195) target = $region36
        $region35: #{tpu_custom_call.1} parent=31 // pred_region
          %198 = dma.done [#allocation5], 64
        $region36: #{tpu_custom_call.1} parent=31 // pred_fallthru
          _
        // Predicated region
        $region37: #{tpu_custom_call.1} parent=31 // pred_check
          %p199 = pneg %p71
        $region38: #{tpu_custom_call.1} parent=31 // pred_check_branch
          %201 = sbr.rel (%p199) target = $region40
        $region39: #{tpu_custom_call.1} parent=31 // pred_region
          %202 = dma.done [#allocation6], 16
        $region40: #{tpu_custom_call.1} parent=31 // pred_fallthru
          _
        %s203 = sand.u32 %s86, 1
        %s204 = scalar_lea.sflag [#allocation3], %s203
        %s205 = sand.u32 %s86, 1
        %s206 = smul.addr %s205, 8
        %s207 = scalar_lea.vmem [#allocation8], %s206
        // Predicated region
        $region41: #{tpu_custom_call.1} parent=31 // pred_check
          %p208 = pneg %p99
        $region42: #{tpu_custom_call.1} parent=31 // pred_check_branch
          %210 = sbr.rel (%p208) target = $region44
        $region43: #{tpu_custom_call.1} parent=31 // pred_region
          %211 = dma.done %s204, 128
        $region44: #{tpu_custom_call.1} parent=31 // pred_fallthru
          _
        %212 = sfence
        %p213 = pneg %p50
        %p214 = pneg %p47
        %p215 = pneg %p71
        %p216 = pneg %p68
        %s217 = sand.u32 %s86, 1
        %s218 = scalar_lea.sflag [#allocation3], %s217
        %s219 = sand.u32 %s86, 1
        %s220 = smul.addr %s219, 8
        %s221 = scalar_lea.vmem [#allocation8], %s220
        %p222 = pneg %p99
        %p223 = pneg %p96
        %p224 = pneg %p127
        %p225 = pneg %p124
        %s226 = sand.u32 %s114, 1
        %s227 = scalar_lea.sflag [#allocation4], %s226
        %s228 = sand.u32 %s114, 1
        %s229 = smul.addr %s228, 6
        %s230 = scalar_lea.vmem [#allocation9], %s229
        %v231 = vld [vmem:[%s207] sm:$0x3]
        %s232 = scalar_lea.vmem %s207, 2 [#allocation8]
        %v233 = vld [vmem:[%s232] sm:$0x3]
        %s234 = scalar_lea.vmem %s207, 4 [#allocation8]
        %v235 = vld [vmem:[%s234] sm:$0x3]
        %s236 = scalar_lea.vmem %s207, 6 [#allocation8]
        %v237 = vld [vmem:[%s236] sm:$0x3]
        %s238 = sld [smem:[#allocation2]]
        %v239 = vstv %s238
        %v240 = vmul.f32 %v231, %v239
        %s241 = sld [smem:[#allocation2 + $0x1]]
        %v242 = vstv %s241
        %v243 = vmul.f32 %v233, %v242
        %v244 = vadd.f32 %v240, %v243
        %s245 = sld [smem:[#allocation2 + $0x2]]
        %v246 = vstv %s245
        %v247 = vmul.f32 %v235, %v246
        %v248 = vadd.f32 %v244, %v247
        %s249 = sld [smem:[#allocation2 + $0x3]]
        %v250 = vstv %s249
        %v251 = vmul.f32 %v237, %v250
        %v252 = vadd.f32 %v248, %v251
        %s253 = sld [smem:[#allocation7]]
        %v254 = vstv %s253
        %v255 = vadd.f32 %v252, %v254
        %s256 = sld [smem:[#allocation2 + $0x80]]
        %v257 = vstv %s256
        %v258 = vmul.f32 %v231, %v257
        %s259 = sld [smem:[#allocation2 + $0x81]]
        %v260 = vstv %s259
        %v261 = vmul.f32 %v233, %v260
        %v262 = vadd.f32 %v258, %v261
        %s263 = sld [smem:[#allocation2 + $0x82]]
        %v264 = vstv %s263
        %v265 = vmul.f32 %v235, %v264
        %v266 = vadd.f32 %v262, %v265
        %s267 = sld [smem:[#allocation2 + $0x83]]
        %v268 = vstv %s267
        %v269 = vmul.f32 %v237, %v268
        %v270 = vadd.f32 %v266, %v269
        %s271 = sld [smem:[#allocation7 + $0x1]]
        %v272 = vstv %s271
        %v273 = vadd.f32 %v270, %v272
        %s274 = sld [smem:[#allocation2 + $0x100]]
        %v275 = vstv %s274
        %v276 = vmul.f32 %v231, %v275
        %s277 = sld [smem:[#allocation2 + $0x101]]
        %v278 = vstv %s277
        %v279 = vmul.f32 %v233, %v278
        %v280 = vadd.f32 %v276, %v279
        %s281 = sld [smem:[#allocation2 + $0x102]]
        %v282 = vstv %s281
        %v283 = vmul.f32 %v235, %v282
        %v284 = vadd.f32 %v280, %v283
        %s285 = sld [smem:[#allocation2 + $0x103]]
        %v286 = vstv %s285
        %v287 = vmul.f32 %v237, %v286
        %v288 = vadd.f32 %v284, %v287
        %s289 = sld [smem:[#allocation7 + $0x2]]
        %v290 = vstv %s289
        %v291 = vadd.f32 %v288, %v290
        %v292 = vmax.f32 %v255, %v273
        %v293 = vmax.f32 %v292, %v291
        %v294 = vsub.f32 %v255, %v293
        %v295 = vmul.f32 %v294, 1.442695
        %v296 = vpow.pop %v295
        %v297 = vsub.f32 %v273, %v293
        %v298 = vmul.f32 %v297, 1.442695
        %v299 = vpow.pop %v298
        %v300 = vsub.f32 %v291, %v293
        %v301 = vmul.f32 %v300, 1.442695
        %v302 = vpow.pop %v301
        %v303 = vadd.f32 %v296, %v299
        %v304 = vadd.f32 %v303, %v302
        %v305 = vrcp.pop %v304
        %v306 = vmul.f32 %v296, %v305
        %307 = vst [vmem:[%s230] sm:$0x3] %v306
        %v308 = vmul.f32 %v299, %v305
        %s309 = scalar_lea.vmem %s230, 2 [#allocation9]
        %310 = vst [vmem:[%s309] sm:$0x3] %v308
        %v311 = vmul.f32 %v302, %v305
        %s312 = scalar_lea.vmem %s230, 4 [#allocation9]
        %313 = vst [vmem:[%s312] sm:$0x3] %v311
        %s314 = sand.u32 %s114, 1
        %s315 = scalar_lea.sflag [#allocation4], %s314
        %s316 = sand.u32 %s114, 1
        %s317 = smul.addr %s316, 6
        %s318 = scalar_lea.vmem [#allocation9], %s317
        // Predicated region
        $region45: #{tpu_custom_call.1} parent=31 // pred_check
          %p319 = pneg %p124
        $region46: #{tpu_custom_call.1} parent=31 // pred_check_branch
          %321 = sbr.rel (%p319) target = $region48
        $region47: #{tpu_custom_call.1} parent=31 // pred_region
          %s323 = ssub.s32 96, 96
          %324 = vsyncadd %s315, %s323
          %s325 = smul.addr %s26, 3
          %s326 = sadd.s32 %s27, %s325
          %s327 = smul.addr %s326, 32
          %s328 = scalar_lea.hbm %s3, %s327
          %s329 = sshll.u32 %s318, 4
          %s330 = int_to_ptr.vmem [resolvable:$true] %s329
          %335 = dma.vmem_to_hbm [thread:$0]  %s330, 96, %s328, %s315, 32, 32, 2
        $region48: #{tpu_custom_call.1} parent=31 // pred_fallthru
          _
      $region32: #{tpu_custom_call.1} parent=5 // pred_fallthru
        _
      %p336 = scmp.le.s32.totalorder 2, %s17
      // Predicated region
      $region49: #{tpu_custom_call.1} parent=5 // pred_check
        %p337 = pneg %p336
      $region50: #{tpu_custom_call.1} parent=5 // pred_check_branch
        %339 = sbr.rel (%p337) target = $region52
      $region51: #{tpu_custom_call.1} parent=5 // pred_region
        %s340 = ssub.s32 %s17, 2
        // Predicated region
        $region53: #{tpu_custom_call.1} parent=51 // pred_check
          %p341 = pneg %p130
        $region54: #{tpu_custom_call.1} parent=51 // pred_check_branch
          %343 = sbr.rel (%p341) target = $region56
        $region55: #{tpu_custom_call.1} parent=51 // pred_region
          %s344 = sand.u32 %s115, 1
          %s345 = scalar_lea.sflag [#allocation4], %s344
          %s346 = sand.u32 %s115, 1
          %s347 = smul.addr %s346, 6
          %s348 = scalar_lea.vmem [#allocation9], %s347
          %349 = dma.done %s345, 96
        $region56: #{tpu_custom_call.1} parent=51 // pred_fallthru
          _
      $region52: #{tpu_custom_call.1} parent=5 // pred_fallthru
        _
    $region6: #{tpu_custom_call.1} parent=1 // loop_footer
      %s21 = sadd.s32 1, %s17
    $region7: #{tpu_custom_call.1} parent=1 // loop_footer_branch
      %16 = sbr.rel target = $region3
    $region8: #{tpu_custom_call.1} parent=1 // loop_exit
      _
    %350 = vsyncpa [#allocation3], 1
    %s351 = scalar_lea.sflag [#allocation3], 1
    %352 = vsyncpa %s351, 1
    %353 = vsyncpa [#allocation4], 1
    %s354 = scalar_lea.sflag [#allocation4], 1
    %355 = vsyncpa %s354, 1
    %356 = vsyncpa [#allocation5], 1
    %s357 = scalar_lea.sflag [#allocation5], 1
    %358 = vsyncpa %s357, 1
    %359 = vsyncpa [#allocation6], 1
    %s360 = scalar_lea.sflag [#allocation6], 1
    %361 = vsyncpa %s360, 1

</llo_original>
